<compile_context>
chip_gen: v7x
topology: tpu7x:2x2x1
jax: 0.10.0
libtpu: 0.0.40
codegen_flags: <defaults>
</compile_context>

<pallas_src>
import functools

import jax
import jax.numpy as jnp
from jax.experimental import pallas as pl
from jax.experimental.pallas import tpu as pltpu

LANE = 128


def _round_up(x, m):
    return ((x + m - 1) // m) * m


def _pad2d(x, rows, cols):
    r, c = x.shape
    return jnp.pad(x, ((0, rows - r), (0, cols - c)))


def _gnn3_kernel(a_ref, x_ref, w1_ref, b1_ref, w2_ref, b2_ref, w3_ref, b3_ref,
                 o_ref, *, compute_dtype):
    """Fused 3-layer SAGEConv('mean') forward.

    a_ref : (Np, Np)            padded row-normalized dense adjacency (compute dtype)
    x_ref : (Np, F0p)           padded input features (compute dtype)
    wL_ref: (2*FinLp, FoutLp)   [W_self ; W_neigh] stacked, zero-padded (compute dtype)
    bL_ref: (1, FoutLp)         bias, zero-padded (f32)
    o_ref : (Np, F3p)           padded output (f32)
    """
    a = a_ref[...]
    h = x_ref[...].astype(jnp.float32)

    def sage_layer(h_f32, w_ref, b_ref, relu):
        h_c = h_f32.astype(compute_dtype)
        # mean aggregation over neighbors on the MXU (A is row-normalized)
        h_neigh = jnp.dot(a, h_c, preferred_element_type=jnp.float32).astype(compute_dtype)
        # fc_self + fc_neigh as ONE matmul: [H | H_neigh] @ [[W_self],[W_neigh]]
        hcat = jnp.concatenate([h_c, h_neigh], axis=-1)
        out = jnp.dot(hcat, w_ref[...], preferred_element_type=jnp.float32) + b_ref[...]
        if relu:
            out = jnp.maximum(out, 0.0)  # f32 epilogue (v5e-safe)
        return out

    h = sage_layer(h, w1_ref, b1_ref, True)
    h = sage_layer(h, w2_ref, b2_ref, True)
    h = sage_layer(h, w3_ref, b3_ref, False)
    o_ref[...] = h.astype(o_ref.dtype)


@functools.partial(jax.jit, static_argnames=("compute_dtype",))
def gnn_forward(a_norm, x, params, *, compute_dtype=jnp.float32):
    """Full 3-layer GNN forward via one fused Pallas kernel.

    a_norm : (N, N)  row-normalized dense adjacency (mean aggregation)
    x      : (N, Fin)
    params : list of 3 tuples (w_self (Fin,Fout), w_neigh (Fin,Fout), bias (Fout,))
    """
    assert len(params) == 3, "kernel is specialized for num_layers=3"
    n, fin = x.shape
    out_size = params[-1][0].shape[1]

    n_pad = _round_up(max(n, 8), LANE)      # lane-dense adjacency + aligned sublanes
    fin_pad = _round_up(fin, LANE)

    a_p = _pad2d(a_norm, n_pad, n_pad).astype(compute_dtype)
    x_p = _pad2d(x, n_pad, fin_pad).astype(compute_dtype)

    # Pack per-layer weights: stack [W_self ; W_neigh] -> (2*Fin_pad, Fout_pad).
    packed = []
    in_pad = fin_pad
    for (w_self, w_neigh, bias) in params:
        f_in, f_out = w_self.shape
        f_out_pad = _round_up(f_out, LANE)
        w_cat = jnp.concatenate(
            [_pad2d(w_self, in_pad, f_out_pad),
             _pad2d(w_neigh, in_pad, f_out_pad)], axis=0).astype(compute_dtype)
        b_p = jnp.pad(bias.reshape(1, -1),
                      ((0, 0), (0, f_out_pad - f_out))).astype(jnp.float32)
        packed.append((w_cat, b_p))
        in_pad = f_out_pad

    (w1, b1), (w2, b2), (w3, b3) = packed
    final_pad = b3.shape[1]

    kernel = functools.partial(_gnn3_kernel, compute_dtype=compute_dtype)
    out_p = pl.pallas_call(
        kernel,
        out_shape=jax.ShapeDtypeStruct((n_pad, final_pad), jnp.float32),
        in_specs=[pl.BlockSpec(memory_space=pltpu.VMEM)] * 8,
        out_specs=pl.BlockSpec(memory_space=pltpu.VMEM),
    )(a_p, x_p, w1, b1, w2, b2, w3, b3)

    return out_p[:n, :out_size]


def init_gnn_params(key, in_size, hid_size, out_size, num_layers=3):
    """SAGEConv(in, out, 'mean')-shaped params; weights stored as (in, out) for x @ W."""
    sizes_in = [in_size] + [hid_size] * (num_layers - 1)
    sizes_out = [hid_size] * (num_layers - 1) + [out_size]
    params = []
    for fin, fout in zip(sizes_in, sizes_out):
        key, k1, k2 = jax.random.split(key, 3)
        scale = 1.0 / jnp.sqrt(jnp.float32(fin))
        w_self = jax.random.uniform(k1, (fin, fout), jnp.float32, -scale, scale)
        w_neigh = jax.random.uniform(k2, (fin, fout), jnp.float32, -scale, scale)
        bias = jnp.zeros((fout,), jnp.float32)
        params.append((w_self, w_neigh, bias))
    return params


def gnn_reference(a_norm, x, params):
    """Pure-JAX f32 reference."""
    h = x
    n_layers = len(params)
    for l, (w_self, w_neigh, bias) in enumerate(params):
        h_neigh = a_norm @ h
        h = h @ w_self + h_neigh @ w_neigh + bias[None, :]
        if l != n_layers - 1:
            h = jnp.maximum(h, 0.0)
    return h


if __name__ == "__main__":
    key = jax.random.PRNGKey(0)

    N = 16          # number of nodes
    IN_SIZE = 8     # input feature size
    HID_SIZE = 32   # hidden size
    OUT_SIZE = 16   # output size (num classes)

    key, k_adj, k_x, k_p = jax.random.split(key, 4)

    # Random sparse-ish directed graph -> dense adjacency, row-normalized (mean agg).
    adj_raw = (jax.random.uniform(k_adj, (N, N)) < 0.3).astype(jnp.float32)
    deg = jnp.maximum(adj_raw.sum(axis=1, keepdims=True), 1.0)
    a_norm = adj_raw / deg

    x = jax.random.normal(k_x, (N, IN_SIZE), jnp.float32)
    params = init_gnn_params(k_p, IN_SIZE, HID_SIZE, OUT_SIZE, num_layers=3)

    ref = gnn_reference(a_norm, x, params)

    # f32 compute path (strict check; v5e-friendly).
    out_f32 = jax.block_until_ready(
        gnn_forward(a_norm, x, params, compute_dtype=jnp.float32))
    assert out_f32.shape == (N, OUT_SIZE)
    assert jnp.allclose(out_f32, ref, atol=1e-5, rtol=1e-5), "f32 mismatch vs reference"

    # bf16 MXU-input path (v6e/v7x throughput mode), f32 accumulation.
    out_bf16 = jax.block_until_ready(
        gnn_forward(a_norm, x, params, compute_dtype=jnp.bfloat16))
    assert out_bf16.shape == (N, OUT_SIZE)
    assert jnp.allclose(out_bf16, ref, atol=1e-1, rtol=1e-1), "bf16 mismatch vs reference"

    print("KERNEL_OK")
</pallas_src>

<mosaic_0001>
module attributes {stable_mosaic.version = 11 : i64} {
  func.func @_gnn3_kernel(%arg0: memref<128x128xf32, #tpu.memory_space<vmem>>, %arg1: memref<128x128xf32, #tpu.memory_space<vmem>>, %arg2: memref<256x128xf32, #tpu.memory_space<vmem>>, %arg3: memref<1x128xf32, #tpu.memory_space<vmem>>, %arg4: memref<256x128xf32, #tpu.memory_space<vmem>>, %arg5: memref<1x128xf32, #tpu.memory_space<vmem>>, %arg6: memref<256x128xf32, #tpu.memory_space<vmem>>, %arg7: memref<1x128xf32, #tpu.memory_space<vmem>>, %arg8: memref<128x128xf32, #tpu.memory_space<vmem>>) attributes {dimension_semantics = [], scalar_prefetch = 0 : i64, scratch_operands = 0 : i64, tpu.core_type = #tpu.core_type<tc>} {
    %c0 = arith.constant 0 : index
    %c0_0 = arith.constant 0 : index
    %0 = vector.load %arg0[%c0, %c0_0] : memref<128x128xf32, #tpu.memory_space<vmem>>, vector<128x128xf32>
    %c0_1 = arith.constant 0 : index
    %c0_2 = arith.constant 0 : index
    %1 = vector.load %arg1[%c0_1, %c0_2] : memref<128x128xf32, #tpu.memory_space<vmem>>, vector<128x128xf32>
    %cst = arith.constant dense<0.000000e+00> : vector<128x128xf32>
    %2 = tpu.matmul %0, %1, %cst {dimension_numbers = #tpu.dot_dimension_numbers<[1], [0], [0], [1], [0, 0, 1, 1], [], []>} : vector<128x128xf32>, vector<128x128xf32>, vector<128x128xf32> -> vector<128x128xf32>
    %3 = tpu.concatenate %1, %2 in 1 : vector<128x128xf32>, vector<128x128xf32> -> vector<128x256xf32>
    %c0_3 = arith.constant 0 : index
    %c0_4 = arith.constant 0 : index
    %4 = vector.load %arg2[%c0_3, %c0_4] : memref<256x128xf32, #tpu.memory_space<vmem>>, vector<256x128xf32>
    %cst_5 = arith.constant dense<0.000000e+00> : vector<128x128xf32>
    %5 = tpu.matmul %3, %4, %cst_5 {dimension_numbers = #tpu.dot_dimension_numbers<[1], [0], [0], [1], [0, 0, 1, 1], [], []>} : vector<128x256xf32>, vector<256x128xf32>, vector<128x128xf32> -> vector<128x128xf32>
    %c0_6 = arith.constant 0 : index
    %c0_7 = arith.constant 0 : index
    %6 = vector.load %arg3[%c0_6, %c0_7] : memref<1x128xf32, #tpu.memory_space<vmem>>, vector<1x128xf32>
    %7 = vector.broadcast %6 : vector<1x128xf32> to vector<128x128xf32>
    %8 = arith.addf %5, %7 : vector<128x128xf32>
    %cst_8 = arith.constant 0.000000e+00 : f32
    %9 = vector.broadcast %cst_8 : f32 to vector<128x128xf32>
    %10 = arith.maximumf %8, %9 : vector<128x128xf32>
    %cst_9 = arith.constant dense<0.000000e+00> : vector<128x128xf32>
    %11 = tpu.matmul %0, %10, %cst_9 {dimension_numbers = #tpu.dot_dimension_numbers<[1], [0], [0], [1], [0, 0, 1, 1], [], []>} : vector<128x128xf32>, vector<128x128xf32>, vector<128x128xf32> -> vector<128x128xf32>
    %12 = tpu.concatenate %10, %11 in 1 : vector<128x128xf32>, vector<128x128xf32> -> vector<128x256xf32>
    %c0_10 = arith.constant 0 : index
    %c0_11 = arith.constant 0 : index
    %13 = vector.load %arg4[%c0_10, %c0_11] : memref<256x128xf32, #tpu.memory_space<vmem>>, vector<256x128xf32>
    %cst_12 = arith.constant dense<0.000000e+00> : vector<128x128xf32>
    %14 = tpu.matmul %12, %13, %cst_12 {dimension_numbers = #tpu.dot_dimension_numbers<[1], [0], [0], [1], [0, 0, 1, 1], [], []>} : vector<128x256xf32>, vector<256x128xf32>, vector<128x128xf32> -> vector<128x128xf32>
    %c0_13 = arith.constant 0 : index
    %c0_14 = arith.constant 0 : index
    %15 = vector.load %arg5[%c0_13, %c0_14] : memref<1x128xf32, #tpu.memory_space<vmem>>, vector<1x128xf32>
    %16 = vector.broadcast %15 : vector<1x128xf32> to vector<128x128xf32>
    %17 = arith.addf %14, %16 : vector<128x128xf32>
    %cst_15 = arith.constant 0.000000e+00 : f32
    %18 = vector.broadcast %cst_15 : f32 to vector<128x128xf32>
    %19 = arith.maximumf %17, %18 : vector<128x128xf32>
    %cst_16 = arith.constant dense<0.000000e+00> : vector<128x128xf32>
    %20 = tpu.matmul %0, %19, %cst_16 {dimension_numbers = #tpu.dot_dimension_numbers<[1], [0], [0], [1], [0, 0, 1, 1], [], []>} : vector<128x128xf32>, vector<128x128xf32>, vector<128x128xf32> -> vector<128x128xf32>
    %21 = tpu.concatenate %19, %20 in 1 : vector<128x128xf32>, vector<128x128xf32> -> vector<128x256xf32>
    %c0_17 = arith.constant 0 : index
    %c0_18 = arith.constant 0 : index
    %22 = vector.load %arg6[%c0_17, %c0_18] : memref<256x128xf32, #tpu.memory_space<vmem>>, vector<256x128xf32>
    %cst_19 = arith.constant dense<0.000000e+00> : vector<128x128xf32>
    %23 = tpu.matmul %21, %22, %cst_19 {dimension_numbers = #tpu.dot_dimension_numbers<[1], [0], [0], [1], [0, 0, 1, 1], [], []>} : vector<128x256xf32>, vector<256x128xf32>, vector<128x128xf32> -> vector<128x128xf32>
    %c0_20 = arith.constant 0 : index
    %c0_21 = arith.constant 0 : index
    %24 = vector.load %arg7[%c0_20, %c0_21] : memref<1x128xf32, #tpu.memory_space<vmem>>, vector<1x128xf32>
    %25 = vector.broadcast %24 : vector<1x128xf32> to vector<128x128xf32>
    %26 = arith.addf %23, %25 : vector<128x128xf32>
    %c0_22 = arith.constant 0 : index
    %c0_23 = arith.constant 0 : index
    %27 = vector.load %arg8[%c0_22, %c0_23] : memref<128x128xf32, #tpu.memory_space<vmem>>, vector<128x128xf32>
    tpu.vector_store %arg8[%c0_22, %c0_23], %26 {strides = array<i32>} : memref<128x128xf32, #tpu.memory_space<vmem>>, vector<128x128xf32>,
    return
  }
}

</mosaic_0001>

<llo_original>
// kernel: gnn_forward.1
$region0: #{gnn_forward.1}
  #allocation0 [shape = 'u32[]', space=smem, size = 0x4, offset = 0x4, fixed_abs, tag = 'smem constant byte address 0x4 - core index']
  #allocation1 [shape = 'u32[144,128]{1,0:T(1,128)}', space=vmem, size = 0x12000, scoped, tag = 'internal scratch']
  %s0 = inlined_call_operand.vmem [shape: f32[128,128], index: 0, kind: input, shape index: {}]
  %s1 = inlined_call_operand.vmem [shape: f32[128,128], index: 1, kind: input, shape index: {}]
  %s2 = inlined_call_operand.vmem [shape: f32[256,128], index: 2, kind: input, shape index: {}]
  %s3 = inlined_call_operand.vmem [shape: f32[1,128], index: 3, kind: input, shape index: {}]
  %s4 = inlined_call_operand.vmem [shape: f32[256,128], index: 4, kind: input, shape index: {}]
  %s5 = inlined_call_operand.vmem [shape: f32[1,128], index: 5, kind: input, shape index: {}]
  %s6 = inlined_call_operand.vmem [shape: f32[256,128], index: 6, kind: input, shape index: {}]
  %s7 = inlined_call_operand.vmem [shape: f32[1,128], index: 7, kind: input, shape index: {}]
  %s8 = inlined_call_operand.vmem [shape: f32[128,128], index: 8, kind: output, shape index: {}]
  %s9 = sld [smem:[#allocation0]]
  $region42: #{gnn_forward.1} parent=0
    _
  %s11 = ssub.s32 1, %s9
  %s12 = scalar_select 0, %s11, %s9
  // Predicated region
  $region2: #{gnn_forward.1} parent=0 // pred_check
    _
  $region3: #{gnn_forward.1} parent=0 // pred_check_branch
    %14 = sbr.rel (0) target = $region5
  $region4: #{gnn_forward.1} parent=0 // pred_region
    _
  $region5: #{gnn_forward.1} parent=0 // pred_fallthru
    _
  // Predicated region
  $region6: #{gnn_forward.1} parent=0 // pred_check
    _
  $region7: #{gnn_forward.1} parent=0 // pred_check_branch
    %16 = sbr.rel (0) target = $region9
  $region8: #{gnn_forward.1} parent=0 // pred_region
    _
  $region9: #{gnn_forward.1} parent=0 // pred_fallthru
    _
  // Predicated region
  $region10: #{gnn_forward.1} parent=0 // pred_check
    _
  $region11: #{gnn_forward.1} parent=0 // pred_check_branch
    %18 = sbr.rel (0) target = $region13
  $region12: #{gnn_forward.1} parent=0 // pred_region
    _
  $region13: #{gnn_forward.1} parent=0 // pred_fallthru
    _
  // Predicated region
  $region14: #{gnn_forward.1} parent=0 // pred_check
    _
  $region15: #{gnn_forward.1} parent=0 // pred_check_branch
    %20 = sbr.rel (0) target = $region17
  $region16: #{gnn_forward.1} parent=0 // pred_region
    _
  $region17: #{gnn_forward.1} parent=0 // pred_fallthru
    _
  // Predicated region
  $region18: #{gnn_forward.1} parent=0 // pred_check
    _
  $region19: #{gnn_forward.1} parent=0 // pred_check_branch
    %22 = sbr.rel (0) target = $region21
  $region20: #{gnn_forward.1} parent=0 // pred_region
    _
  $region21: #{gnn_forward.1} parent=0 // pred_fallthru
    _
  // Predicated region
  $region22: #{gnn_forward.1} parent=0 // pred_check
    _
  $region23: #{gnn_forward.1} parent=0 // pred_check_branch
    %24 = sbr.rel (0) target = $region25
  $region24: #{gnn_forward.1} parent=0 // pred_region
    _
  $region25: #{gnn_forward.1} parent=0 // pred_fallthru
    _
  // Predicated region
  $region26: #{gnn_forward.1} parent=0 // pred_check
    _
  $region27: #{gnn_forward.1} parent=0 // pred_check_branch
    %26 = sbr.rel (0) target = $region29
  $region28: #{gnn_forward.1} parent=0 // pred_region
    _
  $region29: #{gnn_forward.1} parent=0 // pred_fallthru
    _
  // Predicated region
  $region30: #{gnn_forward.1} parent=0 // pred_check
    _
  $region31: #{gnn_forward.1} parent=0 // pred_check_branch
    %28 = sbr.rel (0) target = $region33
  $region32: #{gnn_forward.1} parent=0 // pred_region
    _
  $region33: #{gnn_forward.1} parent=0 // pred_fallthru
    _
  %v29 = vld [vmem:[%s0] sm:$0xff]
  %v30 = vld [vmem:[%s0 + $0x8] sm:$0xff]
  %v31 = vld [vmem:[%s0 + $0x10] sm:$0xff]
  %v32 = vld [vmem:[%s0 + $0x18] sm:$0xff]
  %v33 = vld [vmem:[%s0 + $0x20] sm:$0xff]
  %v34 = vld [vmem:[%s0 + $0x28] sm:$0xff]
  %v35 = vld [vmem:[%s0 + $0x30] sm:$0xff]
  %v36 = vld [vmem:[%s0 + $0x38] sm:$0xff]
  %v37 = vld [vmem:[%s0 + $0x40] sm:$0xff]
  %v38 = vld [vmem:[%s0 + $0x48] sm:$0xff]
  %v39 = vld [vmem:[%s0 + $0x50] sm:$0xff]
  %v40 = vld [vmem:[%s0 + $0x58] sm:$0xff]
  %v41 = vld [vmem:[%s0 + $0x60] sm:$0xff]
  %v42 = vld [vmem:[%s0 + $0x68] sm:$0xff]
  %v43 = vld [vmem:[%s0 + $0x70] sm:$0xff]
  %v44 = vld [vmem:[%s0 + $0x78] sm:$0xff]
  %v45 = vld [vmem:[%s1] sm:$0xff]
  %v46 = vld [vmem:[%s1 + $0x8] sm:$0xff]
  %v47 = vld [vmem:[%s1 + $0x10] sm:$0xff]
  %v48 = vld [vmem:[%s1 + $0x18] sm:$0xff]
  %v49 = vld [vmem:[%s1 + $0x20] sm:$0xff]
  %v50 = vld [vmem:[%s1 + $0x28] sm:$0xff]
  %v51 = vld [vmem:[%s1 + $0x30] sm:$0xff]
  %v52 = vld [vmem:[%s1 + $0x38] sm:$0xff]
  %v53 = vld [vmem:[%s1 + $0x40] sm:$0xff]
  %v54 = vld [vmem:[%s1 + $0x48] sm:$0xff]
  %v55 = vld [vmem:[%s1 + $0x50] sm:$0xff]
  %v56 = vld [vmem:[%s1 + $0x58] sm:$0xff]
  %v57 = vld [vmem:[%s1 + $0x60] sm:$0xff]
  %v58 = vld [vmem:[%s1 + $0x68] sm:$0xff]
  %v59 = vld [vmem:[%s1 + $0x70] sm:$0xff]
  %v60 = vld [vmem:[%s1 + $0x78] sm:$0xff]
  %61 = vmatprep.subr.mxu0 0.0
  %62 = vmatpush1.msra.mxu0 %v45
  %63 = vmatprep.subr.mxu0 0.0
  %64 = vmatpush1.msra.mxu0 %v46
  %65 = vmatprep.subr.mxu0 0.0
  %66 = vmatpush1.msra.mxu0 %v47
  %67 = vmatprep.subr.mxu0 0.0
  %68 = vmatpush1.msra.mxu0 %v48
  %69 = vmatprep.subr.mxu0 0.0
  %70 = vmatpush1.msra.mxu0 %v49
  %71 = vmatprep.subr.mxu0 0.0
  %72 = vmatpush1.msra.mxu0 %v50
  %73 = vmatprep.subr.mxu0 0.0
  %74 = vmatpush1.msra.mxu0 %v51
  %75 = vmatprep.subr.mxu0 0.0
  %76 = vmatpush1.msra.mxu0 %v52
  %77 = vmatprep.subr.mxu0 0.0
  %78 = vmatpush1.msra.mxu0 %v53
  %79 = vmatprep.subr.mxu0 0.0
  %80 = vmatpush1.msra.mxu0 %v54
  %81 = vmatprep.subr.mxu0 0.0
  %82 = vmatpush1.msra.mxu0 %v55
  %83 = vmatprep.subr.mxu0 0.0
  %84 = vmatpush1.msra.mxu0 %v56
  %85 = vmatprep.subr.mxu0 0.0
  %86 = vmatpush1.msra.mxu0 %v57
  %87 = vmatprep.subr.mxu0 0.0
  %88 = vmatpush1.msra.mxu0 %v58
  %89 = vmatprep.subr.mxu0 0.0
  %90 = vmatpush1.msra.mxu0 %v59
  %91 = vmatprep.subr.mxu0 0.0
  %92 = vmatpush1.msra.mxu0 %v60
  %93 = vmatprep.subr.mxu0 0.0
  %94 = vmatpush1.msra.mxu0 0.0
  %95 = vmatprep.subr.mxu0 0.0
  %96 = vmatpush1.msra.mxu0 0.0
  %97 = vmatprep.subr.mxu0 0.0
  %98 = vmatpush1.msra.mxu0 0.0
  %99 = vmatprep.subr.mxu0 0.0
  %100 = vmatpush1.msra.mxu0 0.0
  %101 = vmatprep.subr.mxu0 0.0
  %102 = vmatpush1.msra.mxu0 0.0
  %103 = vmatprep.subr.mxu0 0.0
  %104 = vmatpush1.msra.mxu0 0.0
  %105 = vmatprep.subr.mxu0 0.0
  %106 = vmatpush1.msra.mxu0 0.0
  %107 = vmatprep.subr.mxu0 0.0
  %108 = vmatpush1.msra.mxu0 0.0
  %109 = vmatprep.subr.mxu0 0.0
  %110 = vmatpush1.msra.mxu0 0.0
  %111 = vmatprep.subr.mxu0 0.0
  %112 = vmatpush1.msra.mxu0 0.0
  %113 = vmatprep.subr.mxu0 0.0
  %114 = vmatpush1.msra.mxu0 0.0
  %115 = vmatprep.subr.mxu0 0.0
  %116 = vmatpush1.msra.mxu0 0.0
  %117 = vmatprep.subr.mxu0 0.0
  %118 = vmatpush1.msra.mxu0 0.0
  %119 = vmatprep.subr.mxu0 0.0
  %120 = vmatpush1.msra.mxu0 0.0
  %121 = vmatprep.subr.mxu0 0.0
  %122 = vmatpush1.msra.mxu0 0.0
  %123 = vmatprep.subr.mxu0 0.0
  %124 = vmatpush1.msra.mxu0 0.0
  %125 = vmatprep.mubr.f32.mxu0 0.0
  %126 = vmatmul.mubr.f32.gmra.mrb[0].mxu0 %v29
  %v127 = vpop.f32.mrb[0].mxu0
  %v128 = vadd.f32 0.0, %v127
  %v129 = vpop.f32.mrb[0].mxu0
  %130 = vmatprep.mubr.f32.mxu0 0.0
  %131 = vmatmul.mubr.f32.gmra.mrb[0].mxu0 %v30
  %v132 = vpop.f32.mrb[0].mxu0
  %v133 = vadd.f32 0.0, %v132
  %v134 = vpop.f32.mrb[0].mxu0
  %135 = vmatprep.mubr.f32.mxu0 0.0
  %136 = vmatmul.mubr.f32.gmra.mrb[0].mxu0 %v31
  %v137 = vpop.f32.mrb[0].mxu0
  %v138 = vadd.f32 0.0, %v137
  %v139 = vpop.f32.mrb[0].mxu0
  %140 = vmatprep.mubr.f32.mxu0 0.0
  %141 = vmatmul.mubr.f32.gmra.mrb[0].mxu0 %v32
  %v142 = vpop.f32.mrb[0].mxu0
  %v143 = vadd.f32 0.0, %v142
  %v144 = vpop.f32.mrb[0].mxu0
  %145 = vmatprep.mubr.f32.mxu0 0.0
  %146 = vmatmul.mubr.f32.gmra.mrb[0].mxu0 %v33
  %v147 = vpop.f32.mrb[0].mxu0
  %v148 = vadd.f32 0.0, %v147
  %v149 = vpop.f32.mrb[0].mxu0
  %150 = vmatprep.mubr.f32.mxu0 0.0
  %151 = vmatmul.mubr.f32.gmra.mrb[0].mxu0 %v34
  %v152 = vpop.f32.mrb[0].mxu0
  %v153 = vadd.f32 0.0, %v152
  %v154 = vpop.f32.mrb[0].mxu0
  %155 = vmatprep.mubr.f32.mxu0 0.0
  %156 = vmatmul.mubr.f32.gmra.mrb[0].mxu0 %v35
  %v157 = vpop.f32.mrb[0].mxu0
  %v158 = vadd.f32 0.0, %v157
  %v159 = vpop.f32.mrb[0].mxu0
  %160 = vmatprep.mubr.f32.mxu0 0.0
  %161 = vmatmul.mubr.f32.gmra.mrb[0].mxu0 %v36
  %v162 = vpop.f32.mrb[0].mxu0
  %v163 = vadd.f32 0.0, %v162
  %v164 = vpop.f32.mrb[0].mxu0
  %165 = vmatprep.mubr.f32.mxu0 0.0
  %166 = vmatmul.mubr.f32.gmra.mrb[0].mxu0 %v37
  %v167 = vpop.f32.mrb[0].mxu0
  %v168 = vadd.f32 0.0, %v167
  %v169 = vpop.f32.mrb[0].mxu0
  %170 = vmatprep.mubr.f32.mxu0 0.0
  %171 = vmatmul.mubr.f32.gmra.mrb[0].mxu0 %v38
  %v172 = vpop.f32.mrb[0].mxu0
  %v173 = vadd.f32 0.0, %v172
  %v174 = vpop.f32.mrb[0].mxu0
  %175 = vmatprep.mubr.f32.mxu0 0.0
  %176 = vmatmul.mubr.f32.gmra.mrb[0].mxu0 %v39
  %v177 = vpop.f32.mrb[0].mxu0
  %v178 = vadd.f32 0.0, %v177
  %v179 = vpop.f32.mrb[0].mxu0
  %180 = vmatprep.mubr.f32.mxu0 0.0
  %181 = vmatmul.mubr.f32.gmra.mrb[0].mxu0 %v40
  %v182 = vpop.f32.mrb[0].mxu0
  %v183 = vadd.f32 0.0, %v182
  %v184 = vpop.f32.mrb[0].mxu0
  %185 = vmatprep.mubr.f32.mxu0 0.0
  %186 = vmatmul.mubr.f32.gmra.mrb[0].mxu0 %v41
  %v187 = vpop.f32.mrb[0].mxu0
  %v188 = vadd.f32 0.0, %v187
  %v189 = vpop.f32.mrb[0].mxu0
  %190 = vmatprep.mubr.f32.mxu0 0.0
  %191 = vmatmul.mubr.f32.gmra.mrb[0].mxu0 %v42
  %v192 = vpop.f32.mrb[0].mxu0
  %v193 = vadd.f32 0.0, %v192
  %v194 = vpop.f32.mrb[0].mxu0
  %195 = vmatprep.mubr.f32.mxu0 0.0
  %196 = vmatmul.mubr.f32.gmra.mrb[0].mxu0 %v43
  %v197 = vpop.f32.mrb[0].mxu0
  %v198 = vadd.f32 0.0, %v197
  %v199 = vpop.f32.mrb[0].mxu0
  %200 = vmatprep.mubr.f32.mxu0 0.0
  %201 = vmatmul.mubr.f32.gmra.mrb[0].mxu0 %v44
  %v202 = vpop.f32.mrb[0].mxu0
  %v203 = vadd.f32 0.0, %v202
  %v204 = vpop.f32.mrb[0].mxu0
  %205 = vdwg.mxu0
  %v206 = vld [vmem:[%s2] sm:$0xff]
  %v207 = vld [vmem:[%s2 + $0x8] sm:$0xff]
  %v208 = vld [vmem:[%s2 + $0x10] sm:$0xff]
  %v209 = vld [vmem:[%s2 + $0x18] sm:$0xff]
  %v210 = vld [vmem:[%s2 + $0x20] sm:$0xff]
  %v211 = vld [vmem:[%s2 + $0x28] sm:$0xff]
  %v212 = vld [vmem:[%s2 + $0x30] sm:$0xff]
  %v213 = vld [vmem:[%s2 + $0x38] sm:$0xff]
  %v214 = vld [vmem:[%s2 + $0x40] sm:$0xff]
  %v215 = vld [vmem:[%s2 + $0x48] sm:$0xff]
  %v216 = vld [vmem:[%s2 + $0x50] sm:$0xff]
  %v217 = vld [vmem:[%s2 + $0x58] sm:$0xff]
  %v218 = vld [vmem:[%s2 + $0x60] sm:$0xff]
  %v219 = vld [vmem:[%s2 + $0x68] sm:$0xff]
  %v220 = vld [vmem:[%s2 + $0x70] sm:$0xff]
  %v221 = vld [vmem:[%s2 + $0x78] sm:$0xff]
  %v222 = vld [vmem:[%s2 + $0x80] sm:$0xff]
  %v223 = vld [vmem:[%s2 + $0x88] sm:$0xff]
  %v224 = vld [vmem:[%s2 + $0x90] sm:$0xff]
  %v225 = vld [vmem:[%s2 + $0x98] sm:$0xff]
  %v226 = vld [vmem:[%s2 + $0xa0] sm:$0xff]
  %v227 = vld [vmem:[%s2 + $0xa8] sm:$0xff]
  %v228 = vld [vmem:[%s2 + $0xb0] sm:$0xff]
  %v229 = vld [vmem:[%s2 + $0xb8] sm:$0xff]
  %v230 = vld [vmem:[%s2 + $0xc0] sm:$0xff]
  %v231 = vld [vmem:[%s2 + $0xc8] sm:$0xff]
  %v232 = vld [vmem:[%s2 + $0xd0] sm:$0xff]
  %v233 = vld [vmem:[%s2 + $0xd8] sm:$0xff]
  %v234 = vld [vmem:[%s2 + $0xe0] sm:$0xff]
  %v235 = vld [vmem:[%s2 + $0xe8] sm:$0xff]
  %v236 = vld [vmem:[%s2 + $0xf0] sm:$0xff]
  %v237 = vld [vmem:[%s2 + $0xf8] sm:$0xff]
  %v238 = vld [vmem:[%s3] sm:$0x1]
  %v240 = vlaneseq
  %v241 = vshrl.u32 %v240, 7
  %v242 = vsub.s32 0, %v241
  %v243 = vrot.slane %v238, %v242
  %245 = vmatprep.subr.mxu0 0.0
  %246 = vmatpush1.msra.mxu0 %v206
  %247 = vmatprep.subr.mxu0 0.0
  %248 = vmatpush1.msra.mxu0 %v207
  %249 = vmatprep.subr.mxu0 0.0
  %250 = vmatpush1.msra.mxu0 %v208
  %251 = vmatprep.subr.mxu0 0.0
  %252 = vmatpush1.msra.mxu0 %v209
  %253 = vmatprep.subr.mxu0 0.0
  %254 = vmatpush1.msra.mxu0 %v210
  %255 = vmatprep.subr.mxu0 0.0
  %256 = vmatpush1.msra.mxu0 %v211
  %257 = vmatprep.subr.mxu0 0.0
  %258 = vmatpush1.msra.mxu0 %v212
  %259 = vmatprep.subr.mxu0 0.0
  %260 = vmatpush1.msra.mxu0 %v213
  %261 = vmatprep.subr.mxu0 0.0
  %262 = vmatpush1.msra.mxu0 %v214
  %263 = vmatprep.subr.mxu0 0.0
  %264 = vmatpush1.msra.mxu0 %v215
  %265 = vmatprep.subr.mxu0 0.0
  %266 = vmatpush1.msra.mxu0 %v216
  %267 = vmatprep.subr.mxu0 0.0
  %268 = vmatpush1.msra.mxu0 %v217
  %269 = vmatprep.subr.mxu0 0.0
  %270 = vmatpush1.msra.mxu0 %v218
  %271 = vmatprep.subr.mxu0 0.0
  %272 = vmatpush1.msra.mxu0 %v219
  %273 = vmatprep.subr.mxu0 0.0
  %274 = vmatpush1.msra.mxu0 %v220
  %275 = vmatprep.subr.mxu0 0.0
  %276 = vmatpush1.msra.mxu0 %v221
  %277 = vmatprep.subr.mxu0 0.0
  %278 = vmatpush1.msra.mxu0 %v222
  %279 = vmatprep.subr.mxu0 0.0
  %280 = vmatpush1.msra.mxu0 %v223
  %281 = vmatprep.subr.mxu0 0.0
  %282 = vmatpush1.msra.mxu0 %v224
  %283 = vmatprep.subr.mxu0 0.0
  %284 = vmatpush1.msra.mxu0 %v225
  %285 = vmatprep.subr.mxu0 0.0
  %286 = vmatpush1.msra.mxu0 %v226
  %287 = vmatprep.subr.mxu0 0.0
  %288 = vmatpush1.msra.mxu0 %v227
  %289 = vmatprep.subr.mxu0 0.0
  %290 = vmatpush1.msra.mxu0 %v228
  %291 = vmatprep.subr.mxu0 0.0
  %292 = vmatpush1.msra.mxu0 %v229
  %293 = vmatprep.subr.mxu0 0.0
  %294 = vmatpush1.msra.mxu0 %v230
  %295 = vmatprep.subr.mxu0 0.0
  %296 = vmatpush1.msra.mxu0 %v231
  %297 = vmatprep.subr.mxu0 0.0
  %298 = vmatpush1.msra.mxu0 %v232
  %299 = vmatprep.subr.mxu0 0.0
  %300 = vmatpush1.msra.mxu0 %v233
  %301 = vmatprep.subr.mxu0 0.0
  %302 = vmatpush1.msra.mxu0 %v234
  %303 = vmatprep.subr.mxu0 0.0
  %304 = vmatpush1.msra.mxu0 %v235
  %305 = vmatprep.subr.mxu0 0.0
  %306 = vmatpush1.msra.mxu0 %v236
  %307 = vmatprep.subr.mxu0 0.0
  %308 = vmatpush1.msra.mxu0 %v237
  %309 = vmatprep.mubr.f32.mxu0 %v128
  %310 = vmatmul.mubr.f32.gmra.mrb[0].mxu0 %v45
  %v311 = vpop.f32.mrb[0].mxu0
  %v312 = vadd.f32 %v243, %v311
  %v313 = vpop.f32.mrb[0].mxu0
  %314 = vmatprep.mubr.f32.mxu0 %v133
  %315 = vmatmul.mubr.f32.gmra.mrb[0].mxu0 %v46
  %v316 = vpop.f32.mrb[0].mxu0
  %v317 = vadd.f32 %v243, %v316
  %v318 = vpop.f32.mrb[0].mxu0
  %319 = vmatprep.mubr.f32.mxu0 %v138
  %320 = vmatmul.mubr.f32.gmra.mrb[0].mxu0 %v47
  %v321 = vpop.f32.mrb[0].mxu0
  %v322 = vadd.f32 %v243, %v321
  %v323 = vpop.f32.mrb[0].mxu0
  %324 = vmatprep.mubr.f32.mxu0 %v143
  %325 = vmatmul.mubr.f32.gmra.mrb[0].mxu0 %v48
  %v326 = vpop.f32.mrb[0].mxu0
  %v327 = vadd.f32 %v243, %v326
  %v328 = vpop.f32.mrb[0].mxu0
  %329 = vmatprep.mubr.f32.mxu0 %v148
  %330 = vmatmul.mubr.f32.gmra.mrb[0].mxu0 %v49
  %v331 = vpop.f32.mrb[0].mxu0
  %v332 = vadd.f32 %v243, %v331
  %v333 = vpop.f32.mrb[0].mxu0
  %334 = vmatprep.mubr.f32.mxu0 %v153
  %335 = vmatmul.mubr.f32.gmra.mrb[0].mxu0 %v50
  %v336 = vpop.f32.mrb[0].mxu0
  %v337 = vadd.f32 %v243, %v336
  %v338 = vpop.f32.mrb[0].mxu0
  %339 = vmatprep.mubr.f32.mxu0 %v158
  %340 = vmatmul.mubr.f32.gmra.mrb[0].mxu0 %v51
  %v341 = vpop.f32.mrb[0].mxu0
  %v342 = vadd.f32 %v243, %v341
  %v343 = vpop.f32.mrb[0].mxu0
  %344 = vmatprep.mubr.f32.mxu0 %v163
  %345 = vmatmul.mubr.f32.gmra.mrb[0].mxu0 %v52
  %v346 = vpop.f32.mrb[0].mxu0
  %v347 = vadd.f32 %v243, %v346
  %v348 = vpop.f32.mrb[0].mxu0
  %349 = vmatprep.mubr.f32.mxu0 %v168
  %350 = vmatmul.mubr.f32.gmra.mrb[0].mxu0 %v53
  %v351 = vpop.f32.mrb[0].mxu0
  %v352 = vadd.f32 %v243, %v351
  %v353 = vpop.f32.mrb[0].mxu0
  %354 = vmatprep.mubr.f32.mxu0 %v173
  %355 = vmatmul.mubr.f32.gmra.mrb[0].mxu0 %v54
  %v356 = vpop.f32.mrb[0].mxu0
  %v357 = vadd.f32 %v243, %v356
  %v358 = vpop.f32.mrb[0].mxu0
  %359 = vmatprep.mubr.f32.mxu0 %v178
  %360 = vmatmul.mubr.f32.gmra.mrb[0].mxu0 %v55
  %v361 = vpop.f32.mrb[0].mxu0
  %v362 = vadd.f32 %v243, %v361
  %v363 = vpop.f32.mrb[0].mxu0
  %364 = vmatprep.mubr.f32.mxu0 %v183
  %365 = vmatmul.mubr.f32.gmra.mrb[0].mxu0 %v56
  %v366 = vpop.f32.mrb[0].mxu0
  %v367 = vadd.f32 %v243, %v366
  %v368 = vpop.f32.mrb[0].mxu0
  %369 = vmatprep.mubr.f32.mxu0 %v188
  %370 = vmatmul.mubr.f32.gmra.mrb[0].mxu0 %v57
  %v371 = vpop.f32.mrb[0].mxu0
  %v372 = vadd.f32 %v243, %v371
  %v373 = vpop.f32.mrb[0].mxu0
  %374 = vmatprep.mubr.f32.mxu0 %v193
  %375 = vmatmul.mubr.f32.gmra.mrb[0].mxu0 %v58
  %v376 = vpop.f32.mrb[0].mxu0
  %v377 = vadd.f32 %v243, %v376
  %v378 = vpop.f32.mrb[0].mxu0
  %379 = vmatprep.mubr.f32.mxu0 %v198
  %380 = vmatmul.mubr.f32.gmra.mrb[0].mxu0 %v59
  %v381 = vpop.f32.mrb[0].mxu0
  %v382 = vadd.f32 %v243, %v381
  %v383 = vpop.f32.mrb[0].mxu0
  %384 = vmatprep.mubr.f32.mxu0 %v203
  %385 = vmatmul.mubr.f32.gmra.mrb[0].mxu0 %v60
  %v386 = vpop.f32.mrb[0].mxu0
  %v387 = vadd.f32 %v243, %v386
  %v388 = vpop.f32.mrb[0].mxu0
  %389 = vdwg.mxu0
  %v390 = vmax.f32 %v312, 0.0
  %v391 = vmax.f32 %v317, 0.0
  %v392 = vmax.f32 %v322, 0.0
  %v393 = vmax.f32 %v327, 0.0
  %v394 = vmax.f32 %v332, 0.0
  %v395 = vmax.f32 %v337, 0.0
  %v396 = vmax.f32 %v342, 0.0
  %v397 = vmax.f32 %v347, 0.0
  %v398 = vmax.f32 %v352, 0.0
  %v399 = vmax.f32 %v357, 0.0
  %v400 = vmax.f32 %v362, 0.0
  %v401 = vmax.f32 %v367, 0.0
  %v402 = vmax.f32 %v372, 0.0
  %v403 = vmax.f32 %v377, 0.0
  %v404 = vmax.f32 %v382, 0.0
  %v405 = vmax.f32 %v387, 0.0
  %406 = vmatprep.subr.mxu0 0.0
  %407 = vmatpush1.msra.mxu0 %v390
  %408 = vmatprep.subr.mxu0 0.0
  %409 = vmatpush1.msra.mxu0 %v391
  %410 = vmatprep.subr.mxu0 0.0
  %411 = vmatpush1.msra.mxu0 %v392
  %412 = vmatprep.subr.mxu0 0.0
  %413 = vmatpush1.msra.mxu0 %v393
  %414 = vmatprep.subr.mxu0 0.0
  %415 = vmatpush1.msra.mxu0 %v394
  %416 = vmatprep.subr.mxu0 0.0
  %417 = vmatpush1.msra.mxu0 %v395
  %418 = vmatprep.subr.mxu0 0.0
  %419 = vmatpush1.msra.mxu0 %v396
  %420 = vmatprep.subr.mxu0 0.0
  %421 = vmatpush1.msra.mxu0 %v397
  %422 = vmatprep.subr.mxu0 0.0
  %423 = vmatpush1.msra.mxu0 %v398
  %424 = vmatprep.subr.mxu0 0.0
  %425 = vmatpush1.msra.mxu0 %v399
  %426 = vmatprep.subr.mxu0 0.0
  %427 = vmatpush1.msra.mxu0 %v400
  %428 = vmatprep.subr.mxu0 0.0
  %429 = vmatpush1.msra.mxu0 %v401
  %430 = vmatprep.subr.mxu0 0.0
  %431 = vmatpush1.msra.mxu0 %v402
  %432 = vmatprep.subr.mxu0 0.0
  %433 = vmatpush1.msra.mxu0 %v403
  %434 = vmatprep.subr.mxu0 0.0
  %435 = vmatpush1.msra.mxu0 %v404
  %436 = vmatprep.subr.mxu0 0.0
  %437 = vmatpush1.msra.mxu0 %v405
  %438 = vmatprep.subr.mxu0 0.0
  %439 = vmatpush1.msra.mxu0 0.0
  %440 = vmatprep.subr.mxu0 0.0
  %441 = vmatpush1.msra.mxu0 0.0
  %442 = vmatprep.subr.mxu0 0.0
  %443 = vmatpush1.msra.mxu0 0.0
  %444 = vmatprep.subr.mxu0 0.0
  %445 = vmatpush1.msra.mxu0 0.0
  %446 = vmatprep.subr.mxu0 0.0
  %447 = vmatpush1.msra.mxu0 0.0
  %448 = vmatprep.subr.mxu0 0.0
  %449 = vmatpush1.msra.mxu0 0.0
  %450 = vmatprep.subr.mxu0 0.0
  %451 = vmatpush1.msra.mxu0 0.0
  %452 = vmatprep.subr.mxu0 0.0
  %453 = vmatpush1.msra.mxu0 0.0
  %454 = vmatprep.subr.mxu0 0.0
  %455 = vmatpush1.msra.mxu0 0.0
  %456 = vmatprep.subr.mxu0 0.0
  %457 = vmatpush1.msra.mxu0 0.0
  %458 = vmatprep.subr.mxu0 0.0
  %459 = vmatpush1.msra.mxu0 0.0
  %460 = vmatprep.subr.mxu0 0.0
  %461 = vmatpush1.msra.mxu0 0.0
  %462 = vmatprep.subr.mxu0 0.0
  %463 = vmatpush1.msra.mxu0 0.0
  %464 = vmatprep.subr.mxu0 0.0
  %465 = vmatpush1.msra.mxu0 0.0
  %466 = vmatprep.subr.mxu0 0.0
  %467 = vmatpush1.msra.mxu0 0.0
  %468 = vmatprep.subr.mxu0 0.0
  %469 = vmatpush1.msra.mxu0 0.0
  %470 = vmatprep.mubr.f32.mxu0 0.0
  %471 = vmatmul.mubr.f32.gmra.mrb[0].mxu0 %v29
  %v472 = vpop.f32.mrb[0].mxu0
  %v473 = vadd.f32 0.0, %v472
  %v474 = vpop.f32.mrb[0].mxu0
  %475 = vmatprep.mubr.f32.mxu0 0.0
  %476 = vmatmul.mubr.f32.gmra.mrb[0].mxu0 %v30
  %v477 = vpop.f32.mrb[0].mxu0
  %v478 = vadd.f32 0.0, %v477
  %v479 = vpop.f32.mrb[0].mxu0
  %480 = vmatprep.mubr.f32.mxu0 0.0
  %481 = vmatmul.mubr.f32.gmra.mrb[0].mxu0 %v31
  %v482 = vpop.f32.mrb[0].mxu0
  %v483 = vadd.f32 0.0, %v482
  %v484 = vpop.f32.mrb[0].mxu0
  %485 = vmatprep.mubr.f32.mxu0 0.0
  %486 = vmatmul.mubr.f32.gmra.mrb[0].mxu0 %v32
  %v487 = vpop.f32.mrb[0].mxu0
  %v488 = vadd.f32 0.0, %v487
  %v489 = vpop.f32.mrb[0].mxu0
  %490 = vmatprep.mubr.f32.mxu0 0.0
  %491 = vmatmul.mubr.f32.gmra.mrb[0].mxu0 %v33
  %v492 = vpop.f32.mrb[0].mxu0
  %v493 = vadd.f32 0.0, %v492
  %v494 = vpop.f32.mrb[0].mxu0
  %495 = vmatprep.mubr.f32.mxu0 0.0
  %496 = vmatmul.mubr.f32.gmra.mrb[0].mxu0 %v34
  %v497 = vpop.f32.mrb[0].mxu0
  %v498 = vadd.f32 0.0, %v497
  %v499 = vpop.f32.mrb[0].mxu0
  %500 = vmatprep.mubr.f32.mxu0 0.0
  %501 = vmatmul.mubr.f32.gmra.mrb[0].mxu0 %v35
  %v502 = vpop.f32.mrb[0].mxu0
  %v503 = vadd.f32 0.0, %v502
  %v504 = vpop.f32.mrb[0].mxu0
  %505 = vmatprep.mubr.f32.mxu0 0.0
  %506 = vmatmul.mubr.f32.gmra.mrb[0].mxu0 %v36
  %v507 = vpop.f32.mrb[0].mxu0
  %v508 = vadd.f32 0.0, %v507
  %v509 = vpop.f32.mrb[0].mxu0
  %510 = vmatprep.mubr.f32.mxu0 0.0
  %511 = vmatmul.mubr.f32.gmra.mrb[0].mxu0 %v37
  %v512 = vpop.f32.mrb[0].mxu0
  %v513 = vadd.f32 0.0, %v512
  %v514 = vpop.f32.mrb[0].mxu0
  %515 = vmatprep.mubr.f32.mxu0 0.0
  %516 = vmatmul.mubr.f32.gmra.mrb[0].mxu0 %v38
  %v517 = vpop.f32.mrb[0].mxu0
  %v518 = vadd.f32 0.0, %v517
  %v519 = vpop.f32.mrb[0].mxu0
  %520 = vmatprep.mubr.f32.mxu0 0.0
  %521 = vmatmul.mubr.f32.gmra.mrb[0].mxu0 %v39
  %v522 = vpop.f32.mrb[0].mxu0
  %v523 = vadd.f32 0.0, %v522
  %v524 = vpop.f32.mrb[0].mxu0
  %525 = vmatprep.mubr.f32.mxu0 0.0
  %526 = vmatmul.mubr.f32.gmra.mrb[0].mxu0 %v40
  %v527 = vpop.f32.mrb[0].mxu0
  %v528 = vadd.f32 0.0, %v527
  %v529 = vpop.f32.mrb[0].mxu0
  %530 = vmatprep.mubr.f32.mxu0 0.0
  %531 = vmatmul.mubr.f32.gmra.mrb[0].mxu0 %v41
  %v532 = vpop.f32.mrb[0].mxu0
  %v533 = vadd.f32 0.0, %v532
  %v534 = vpop.f32.mrb[0].mxu0
  %535 = vmatprep.mubr.f32.mxu0 0.0
  %536 = vmatmul.mubr.f32.gmra.mrb[0].mxu0 %v42
  %v537 = vpop.f32.mrb[0].mxu0
  %v538 = vadd.f32 0.0, %v537
  %v539 = vpop.f32.mrb[0].mxu0
  %540 = vmatprep.mubr.f32.mxu0 0.0
  %541 = vmatmul.mubr.f32.gmra.mrb[0].mxu0 %v43
  %v542 = vpop.f32.mrb[0].mxu0
  %v543 = vadd.f32 0.0, %v542
  %v544 = vpop.f32.mrb[0].mxu0
  %545 = vmatprep.mubr.f32.mxu0 0.0
  %546 = vmatmul.mubr.f32.gmra.mrb[0].mxu0 %v44
  %v547 = vpop.f32.mrb[0].mxu0
  %v548 = vadd.f32 0.0, %v547
  %v549 = vpop.f32.mrb[0].mxu0
  %550 = vdwg.mxu0
  %v551 = vld [vmem:[%s4] sm:$0xff]
  %v552 = vld [vmem:[%s4 + $0x8] sm:$0xff]
  %v553 = vld [vmem:[%s4 + $0x10] sm:$0xff]
  %v554 = vld [vmem:[%s4 + $0x18] sm:$0xff]
  %v555 = vld [vmem:[%s4 + $0x20] sm:$0xff]
  %v556 = vld [vmem:[%s4 + $0x28] sm:$0xff]
  %v557 = vld [vmem:[%s4 + $0x30] sm:$0xff]
  %v558 = vld [vmem:[%s4 + $0x38] sm:$0xff]
  %v559 = vld [vmem:[%s4 + $0x40] sm:$0xff]
  %v560 = vld [vmem:[%s4 + $0x48] sm:$0xff]
  %v561 = vld [vmem:[%s4 + $0x50] sm:$0xff]
  %v562 = vld [vmem:[%s4 + $0x58] sm:$0xff]
  %v563 = vld [vmem:[%s4 + $0x60] sm:$0xff]
  %v564 = vld [vmem:[%s4 + $0x68] sm:$0xff]
  %v565 = vld [vmem:[%s4 + $0x70] sm:$0xff]
  %v566 = vld [vmem:[%s4 + $0x78] sm:$0xff]
  %v567 = vld [vmem:[%s4 + $0x80] sm:$0xff]
  %v568 = vld [vmem:[%s4 + $0x88] sm:$0xff]
  %v569 = vld [vmem:[%s4 + $0x90] sm:$0xff]
  %v570 = vld [vmem:[%s4 + $0x98] sm:$0xff]
  %v571 = vld [vmem:[%s4 + $0xa0] sm:$0xff]
  %v572 = vld [vmem:[%s4 + $0xa8] sm:$0xff]
  %v573 = vld [vmem:[%s4 + $0xb0] sm:$0xff]
  %v574 = vld [vmem:[%s4 + $0xb8] sm:$0xff]
  %v575 = vld [vmem:[%s4 + $0xc0] sm:$0xff]
  %v576 = vld [vmem:[%s4 + $0xc8] sm:$0xff]
  %v577 = vld [vmem:[%s4 + $0xd0] sm:$0xff]
  %v578 = vld [vmem:[%s4 + $0xd8] sm:$0xff]
  %v579 = vld [vmem:[%s4 + $0xe0] sm:$0xff]
  %v580 = vld [vmem:[%s4 + $0xe8] sm:$0xff]
  %v581 = vld [vmem:[%s4 + $0xf0] sm:$0xff]
  %v582 = vld [vmem:[%s4 + $0xf8] sm:$0xff]
  %v583 = vld [vmem:[%s5] sm:$0x1]
  %v585 = vlaneseq
  %v586 = vshrl.u32 %v585, 7
  %v587 = vsub.s32 0, %v586
  %v588 = vrot.slane %v583, %v587
  %590 = vmatprep.subr.mxu0 0.0
  %591 = vmatpush1.msra.mxu0 %v551
  %592 = vmatprep.subr.mxu0 0.0
  %593 = vmatpush1.msra.mxu0 %v552
  %594 = vmatprep.subr.mxu0 0.0
  %595 = vmatpush1.msra.mxu0 %v553
  %596 = vmatprep.subr.mxu0 0.0
  %597 = vmatpush1.msra.mxu0 %v554
  %598 = vmatprep.subr.mxu0 0.0
  %599 = vmatpush1.msra.mxu0 %v555
  %600 = vmatprep.subr.mxu0 0.0
  %601 = vmatpush1.msra.mxu0 %v556
  %602 = vmatprep.subr.mxu0 0.0
  %603 = vmatpush1.msra.mxu0 %v557
  %604 = vmatprep.subr.mxu0 0.0
  %605 = vmatpush1.msra.mxu0 %v558
  %606 = vmatprep.subr.mxu0 0.0
  %607 = vmatpush1.msra.mxu0 %v559
  %608 = vmatprep.subr.mxu0 0.0
  %609 = vmatpush1.msra.mxu0 %v560
  %610 = vmatprep.subr.mxu0 0.0
  %611 = vmatpush1.msra.mxu0 %v561
  %612 = vmatprep.subr.mxu0 0.0
  %613 = vmatpush1.msra.mxu0 %v562
  %614 = vmatprep.subr.mxu0 0.0
  %615 = vmatpush1.msra.mxu0 %v563
  %616 = vmatprep.subr.mxu0 0.0
  %617 = vmatpush1.msra.mxu0 %v564
  %618 = vmatprep.subr.mxu0 0.0
  %619 = vmatpush1.msra.mxu0 %v565
  %620 = vmatprep.subr.mxu0 0.0
  %621 = vmatpush1.msra.mxu0 %v566
  %622 = vmatprep.subr.mxu0 0.0
  %623 = vmatpush1.msra.mxu0 %v567
  %624 = vmatprep.subr.mxu0 0.0
  %625 = vmatpush1.msra.mxu0 %v568
  %626 = vmatprep.subr.mxu0 0.0
  %627 = vmatpush1.msra.mxu0 %v569
  %628 = vmatprep.subr.mxu0 0.0
  %629 = vmatpush1.msra.mxu0 %v570
  %630 = vmatprep.subr.mxu0 0.0
  %631 = vmatpush1.msra.mxu0 %v571
  %632 = vmatprep.subr.mxu0 0.0
  %633 = vmatpush1.msra.mxu0 %v572
  %634 = vmatprep.subr.mxu0 0.0
  %635 = vmatpush1.msra.mxu0 %v573
  %636 = vmatprep.subr.mxu0 0.0
  %637 = vmatpush1.msra.mxu0 %v574
  %638 = vmatprep.subr.mxu0 0.0
  %639 = vmatpush1.msra.mxu0 %v575
  %640 = vmatprep.subr.mxu0 0.0
  %641 = vmatpush1.msra.mxu0 %v576
  %642 = vmatprep.subr.mxu0 0.0
  %643 = vmatpush1.msra.mxu0 %v577
  %644 = vmatprep.subr.mxu0 0.0
  %645 = vmatpush1.msra.mxu0 %v578
  %646 = vmatprep.subr.mxu0 0.0
  %647 = vmatpush1.msra.mxu0 %v579
  %648 = vmatprep.subr.mxu0 0.0
  %649 = vmatpush1.msra.mxu0 %v580
  %650 = vmatprep.subr.mxu0 0.0
  %651 = vmatpush1.msra.mxu0 %v581
  %652 = vmatprep.subr.mxu0 0.0
  %653 = vmatpush1.msra.mxu0 %v582
  %654 = vmatprep.mubr.f32.mxu0 %v473
  %655 = vmatmul.mubr.f32.gmra.mrb[0].mxu0 %v390
  %v656 = vpop.f32.mrb[0].mxu0
  %v657 = vadd.f32 %v588, %v656
  %v658 = vpop.f32.mrb[0].mxu0
  %659 = vmatprep.mubr.f32.mxu0 %v478
  %660 = vmatmul.mubr.f32.gmra.mrb[0].mxu0 %v391
  %v661 = vpop.f32.mrb[0].mxu0
  %v662 = vadd.f32 %v588, %v661
  %v663 = vpop.f32.mrb[0].mxu0
  %664 = vmatprep.mubr.f32.mxu0 %v483
  %665 = vmatmul.mubr.f32.gmra.mrb[0].mxu0 %v392
  %v666 = vpop.f32.mrb[0].mxu0
  %v667 = vadd.f32 %v588, %v666
  %v668 = vpop.f32.mrb[0].mxu0
  %669 = vmatprep.mubr.f32.mxu0 %v488
  %670 = vmatmul.mubr.f32.gmra.mrb[0].mxu0 %v393
  %v671 = vpop.f32.mrb[0].mxu0
  %v672 = vadd.f32 %v588, %v671
  %v673 = vpop.f32.mrb[0].mxu0
  %674 = vmatprep.mubr.f32.mxu0 %v493
  %675 = vmatmul.mubr.f32.gmra.mrb[0].mxu0 %v394
  %v676 = vpop.f32.mrb[0].mxu0
  %v677 = vadd.f32 %v588, %v676
  %v678 = vpop.f32.mrb[0].mxu0
  %679 = vmatprep.mubr.f32.mxu0 %v498
  %680 = vmatmul.mubr.f32.gmra.mrb[0].mxu0 %v395
  %v681 = vpop.f32.mrb[0].mxu0
  %v682 = vadd.f32 %v588, %v681
  %v683 = vpop.f32.mrb[0].mxu0
  %684 = vmatprep.mubr.f32.mxu0 %v503
  %685 = vmatmul.mubr.f32.gmra.mrb[0].mxu0 %v396
  %v686 = vpop.f32.mrb[0].mxu0
  %v687 = vadd.f32 %v588, %v686
  %v688 = vpop.f32.mrb[0].mxu0
  %689 = vmatprep.mubr.f32.mxu0 %v508
  %690 = vmatmul.mubr.f32.gmra.mrb[0].mxu0 %v397
  %v691 = vpop.f32.mrb[0].mxu0
  %v692 = vadd.f32 %v588, %v691
  %v693 = vpop.f32.mrb[0].mxu0
  %694 = vmatprep.mubr.f32.mxu0 %v513
  %695 = vmatmul.mubr.f32.gmra.mrb[0].mxu0 %v398
  %v696 = vpop.f32.mrb[0].mxu0
  %v697 = vadd.f32 %v588, %v696
  %v698 = vpop.f32.mrb[0].mxu0
  %699 = vmatprep.mubr.f32.mxu0 %v518
  %700 = vmatmul.mubr.f32.gmra.mrb[0].mxu0 %v399
  %v701 = vpop.f32.mrb[0].mxu0
  %v702 = vadd.f32 %v588, %v701
  %v703 = vpop.f32.mrb[0].mxu0
  %704 = vmatprep.mubr.f32.mxu0 %v523
  %705 = vmatmul.mubr.f32.gmra.mrb[0].mxu0 %v400
  %v706 = vpop.f32.mrb[0].mxu0
  %v707 = vadd.f32 %v588, %v706
  %v708 = vpop.f32.mrb[0].mxu0
  %709 = vmatprep.mubr.f32.mxu0 %v528
  %710 = vmatmul.mubr.f32.gmra.mrb[0].mxu0 %v401
  %v711 = vpop.f32.mrb[0].mxu0
  %v712 = vadd.f32 %v588, %v711
  %v713 = vpop.f32.mrb[0].mxu0
  %714 = vmatprep.mubr.f32.mxu0 %v533
  %715 = vmatmul.mubr.f32.gmra.mrb[0].mxu0 %v402
  %v716 = vpop.f32.mrb[0].mxu0
  %v717 = vadd.f32 %v588, %v716
  %v718 = vpop.f32.mrb[0].mxu0
  %719 = vmatprep.mubr.f32.mxu0 %v538
  %720 = vmatmul.mubr.f32.gmra.mrb[0].mxu0 %v403
  %v721 = vpop.f32.mrb[0].mxu0
  %v722 = vadd.f32 %v588, %v721
  %v723 = vpop.f32.mrb[0].mxu0
  %724 = vmatprep.mubr.f32.mxu0 %v543
  %725 = vmatmul.mubr.f32.gmra.mrb[0].mxu0 %v404
  %v726 = vpop.f32.mrb[0].mxu0
  %v727 = vadd.f32 %v588, %v726
  %v728 = vpop.f32.mrb[0].mxu0
  %729 = vmatprep.mubr.f32.mxu0 %v548
  %730 = vmatmul.mubr.f32.gmra.mrb[0].mxu0 %v405
  %v731 = vpop.f32.mrb[0].mxu0
  %v732 = vadd.f32 %v588, %v731
  %v733 = vpop.f32.mrb[0].mxu0
  %734 = vdwg.mxu0
  %v735 = vmax.f32 %v657, 0.0
  %v736 = vmax.f32 %v662, 0.0
  %v737 = vmax.f32 %v667, 0.0
  %v738 = vmax.f32 %v672, 0.0
  %v739 = vmax.f32 %v677, 0.0
  %v740 = vmax.f32 %v682, 0.0
  %v741 = vmax.f32 %v687, 0.0
  %v742 = vmax.f32 %v692, 0.0
  %v743 = vmax.f32 %v697, 0.0
  %v744 = vmax.f32 %v702, 0.0
  %v745 = vmax.f32 %v707, 0.0
  %v746 = vmax.f32 %v712, 0.0
  %v747 = vmax.f32 %v717, 0.0
  %v748 = vmax.f32 %v722, 0.0
  %v749 = vmax.f32 %v727, 0.0
  %v750 = vmax.f32 %v732, 0.0
  %751 = vmatprep.subr.mxu0 0.0
  %752 = vmatpush1.msra.mxu0 %v735
  %753 = vmatprep.subr.mxu0 0.0
  %754 = vmatpush1.msra.mxu0 %v736
  %755 = vmatprep.subr.mxu0 0.0
  %756 = vmatpush1.msra.mxu0 %v737
  %757 = vmatprep.subr.mxu0 0.0
  %758 = vmatpush1.msra.mxu0 %v738
  %759 = vmatprep.subr.mxu0 0.0
  %760 = vmatpush1.msra.mxu0 %v739
  %761 = vmatprep.subr.mxu0 0.0
  %762 = vmatpush1.msra.mxu0 %v740
  %763 = vmatprep.subr.mxu0 0.0
  %764 = vmatpush1.msra.mxu0 %v741
  %765 = vmatprep.subr.mxu0 0.0
  %766 = vmatpush1.msra.mxu0 %v742
  %767 = vmatprep.subr.mxu0 0.0
  %768 = vmatpush1.msra.mxu0 %v743
  %769 = vmatprep.subr.mxu0 0.0
  %770 = vmatpush1.msra.mxu0 %v744
  %771 = vmatprep.subr.mxu0 0.0
  %772 = vmatpush1.msra.mxu0 %v745
  %773 = vmatprep.subr.mxu0 0.0
  %774 = vmatpush1.msra.mxu0 %v746
  %775 = vmatprep.subr.mxu0 0.0
  %776 = vmatpush1.msra.mxu0 %v747
  %777 = vmatprep.subr.mxu0 0.0
  %778 = vmatpush1.msra.mxu0 %v748
  %779 = vmatprep.subr.mxu0 0.0
  %780 = vmatpush1.msra.mxu0 %v749
  %781 = vmatprep.subr.mxu0 0.0
  %782 = vmatpush1.msra.mxu0 %v750
  %783 = vmatprep.subr.mxu0 0.0
  %784 = vmatpush1.msra.mxu0 0.0
  %785 = vmatprep.subr.mxu0 0.0
  %786 = vmatpush1.msra.mxu0 0.0
  %787 = vmatprep.subr.mxu0 0.0
  %788 = vmatpush1.msra.mxu0 0.0
  %789 = vmatprep.subr.mxu0 0.0
  %790 = vmatpush1.msra.mxu0 0.0
  %791 = vmatprep.subr.mxu0 0.0
  %792 = vmatpush1.msra.mxu0 0.0
  %793 = vmatprep.subr.mxu0 0.0
  %794 = vmatpush1.msra.mxu0 0.0
  %795 = vmatprep.subr.mxu0 0.0
  %796 = vmatpush1.msra.mxu0 0.0
  %797 = vmatprep.subr.mxu0 0.0
  %798 = vmatpush1.msra.mxu0 0.0
  %799 = vmatprep.subr.mxu0 0.0
  %800 = vmatpush1.msra.mxu0 0.0
  %801 = vmatprep.subr.mxu0 0.0
  %802 = vmatpush1.msra.mxu0 0.0
  %803 = vmatprep.subr.mxu0 0.0
  %804 = vmatpush1.msra.mxu0 0.0
  %805 = vmatprep.subr.mxu0 0.0
  %806 = vmatpush1.msra.mxu0 0.0
  %807 = vmatprep.subr.mxu0 0.0
  %808 = vmatpush1.msra.mxu0 0.0
  %809 = vmatprep.subr.mxu0 0.0
  %810 = vmatpush1.msra.mxu0 0.0
  %811 = vmatprep.subr.mxu0 0.0
  %812 = vmatpush1.msra.mxu0 0.0
  %813 = vmatprep.subr.mxu0 0.0
  %814 = vmatpush1.msra.mxu0 0.0
  %815 = vmatprep.mubr.f32.mxu0 0.0
  %816 = vmatmul.mubr.f32.gmra.mrb[0].mxu0 %v29
  %v817 = vpop.f32.mrb[0].mxu0
  %v818 = vadd.f32 0.0, %v817
  %v819 = vpop.f32.mrb[0].mxu0
  %820 = vmatprep.mubr.f32.mxu0 0.0
  %821 = vmatmul.mubr.f32.gmra.mrb[0].mxu0 %v30
  %v822 = vpop.f32.mrb[0].mxu0
  %v823 = vadd.f32 0.0, %v822
  %v824 = vpop.f32.mrb[0].mxu0
  %825 = vmatprep.mubr.f32.mxu0 0.0
  %826 = vmatmul.mubr.f32.gmra.mrb[0].mxu0 %v31
  %v827 = vpop.f32.mrb[0].mxu0
  %v828 = vadd.f32 0.0, %v827
  %v829 = vpop.f32.mrb[0].mxu0
  %830 = vmatprep.mubr.f32.mxu0 0.0
  %831 = vmatmul.mubr.f32.gmra.mrb[0].mxu0 %v32
  %v832 = vpop.f32.mrb[0].mxu0
  %v833 = vadd.f32 0.0, %v832
  %v834 = vpop.f32.mrb[0].mxu0
  %835 = vmatprep.mubr.f32.mxu0 0.0
  %836 = vmatmul.mubr.f32.gmra.mrb[0].mxu0 %v33
  %v837 = vpop.f32.mrb[0].mxu0
  %v838 = vadd.f32 0.0, %v837
  %v839 = vpop.f32.mrb[0].mxu0
  %840 = vmatprep.mubr.f32.mxu0 0.0
  %841 = vmatmul.mubr.f32.gmra.mrb[0].mxu0 %v34
  %v842 = vpop.f32.mrb[0].mxu0
  %v843 = vadd.f32 0.0, %v842
  %v844 = vpop.f32.mrb[0].mxu0
  %845 = vmatprep.mubr.f32.mxu0 0.0
  %846 = vmatmul.mubr.f32.gmra.mrb[0].mxu0 %v35
  %v847 = vpop.f32.mrb[0].mxu0
  %v848 = vadd.f32 0.0, %v847
  %v849 = vpop.f32.mrb[0].mxu0
  %850 = vmatprep.mubr.f32.mxu0 0.0
  %851 = vmatmul.mubr.f32.gmra.mrb[0].mxu0 %v36
  %v852 = vpop.f32.mrb[0].mxu0
  %v853 = vadd.f32 0.0, %v852
  %v854 = vpop.f32.mrb[0].mxu0
  %855 = vmatprep.mubr.f32.mxu0 0.0
  %856 = vmatmul.mubr.f32.gmra.mrb[0].mxu0 %v37
  %v857 = vpop.f32.mrb[0].mxu0
  %v858 = vadd.f32 0.0, %v857
  %v859 = vpop.f32.mrb[0].mxu0
  %860 = vmatprep.mubr.f32.mxu0 0.0
  %861 = vmatmul.mubr.f32.gmra.mrb[0].mxu0 %v38
  %v862 = vpop.f32.mrb[0].mxu0
  %v863 = vadd.f32 0.0, %v862
  %v864 = vpop.f32.mrb[0].mxu0
  %865 = vmatprep.mubr.f32.mxu0 0.0
  %866 = vmatmul.mubr.f32.gmra.mrb[0].mxu0 %v39
  %v867 = vpop.f32.mrb[0].mxu0
  %v868 = vadd.f32 0.0, %v867
  %v869 = vpop.f32.mrb[0].mxu0
  %870 = vmatprep.mubr.f32.mxu0 0.0
  %871 = vmatmul.mubr.f32.gmra.mrb[0].mxu0 %v40
  %v872 = vpop.f32.mrb[0].mxu0
  %v873 = vadd.f32 0.0, %v872
  %v874 = vpop.f32.mrb[0].mxu0
  %875 = vmatprep.mubr.f32.mxu0 0.0
  %876 = vmatmul.mubr.f32.gmra.mrb[0].mxu0 %v41
  %v877 = vpop.f32.mrb[0].mxu0
  %v878 = vadd.f32 0.0, %v877
  %v879 = vpop.f32.mrb[0].mxu0
  %880 = vmatprep.mubr.f32.mxu0 0.0
  %881 = vmatmul.mubr.f32.gmra.mrb[0].mxu0 %v42
  %v882 = vpop.f32.mrb[0].mxu0
  %v883 = vadd.f32 0.0, %v882
  %v884 = vpop.f32.mrb[0].mxu0
  %885 = vmatprep.mubr.f32.mxu0 0.0
  %886 = vmatmul.mubr.f32.gmra.mrb[0].mxu0 %v43
  %v887 = vpop.f32.mrb[0].mxu0
  %v888 = vadd.f32 0.0, %v887
  %v889 = vpop.f32.mrb[0].mxu0
  %890 = vmatprep.mubr.f32.mxu0 0.0
  %891 = vmatmul.mubr.f32.gmra.mrb[0].mxu0 %v44
  %v892 = vpop.f32.mrb[0].mxu0
  %v893 = vadd.f32 0.0, %v892
  %v894 = vpop.f32.mrb[0].mxu0
  %895 = vdwg.mxu0
  %v896 = vld [vmem:[%s6] sm:$0xff]
  %v897 = vld [vmem:[%s6 + $0x8] sm:$0xff]
  %v898 = vld [vmem:[%s6 + $0x10] sm:$0xff]
  %v899 = vld [vmem:[%s6 + $0x18] sm:$0xff]
  %v900 = vld [vmem:[%s6 + $0x20] sm:$0xff]
  %v901 = vld [vmem:[%s6 + $0x28] sm:$0xff]
  %v902 = vld [vmem:[%s6 + $0x30] sm:$0xff]
  %v903 = vld [vmem:[%s6 + $0x38] sm:$0xff]
  %v904 = vld [vmem:[%s6 + $0x40] sm:$0xff]
  %v905 = vld [vmem:[%s6 + $0x48] sm:$0xff]
  %v906 = vld [vmem:[%s6 + $0x50] sm:$0xff]
  %v907 = vld [vmem:[%s6 + $0x58] sm:$0xff]
  %v908 = vld [vmem:[%s6 + $0x60] sm:$0xff]
  %v909 = vld [vmem:[%s6 + $0x68] sm:$0xff]
  %v910 = vld [vmem:[%s6 + $0x70] sm:$0xff]
  %v911 = vld [vmem:[%s6 + $0x78] sm:$0xff]
  %v912 = vld [vmem:[%s6 + $0x80] sm:$0xff]
  %v913 = vld [vmem:[%s6 + $0x88] sm:$0xff]
  %v914 = vld [vmem:[%s6 + $0x90] sm:$0xff]
  %v915 = vld [vmem:[%s6 + $0x98] sm:$0xff]
  %v916 = vld [vmem:[%s6 + $0xa0] sm:$0xff]
  %v917 = vld [vmem:[%s6 + $0xa8] sm:$0xff]
  %v918 = vld [vmem:[%s6 + $0xb0] sm:$0xff]
  %v919 = vld [vmem:[%s6 + $0xb8] sm:$0xff]
  %v920 = vld [vmem:[%s6 + $0xc0] sm:$0xff]
  %v921 = vld [vmem:[%s6 + $0xc8] sm:$0xff]
  %v922 = vld [vmem:[%s6 + $0xd0] sm:$0xff]
  %v923 = vld [vmem:[%s6 + $0xd8] sm:$0xff]
  %v924 = vld [vmem:[%s6 + $0xe0] sm:$0xff]
  %v925 = vld [vmem:[%s6 + $0xe8] sm:$0xff]
  %v926 = vld [vmem:[%s6 + $0xf0] sm:$0xff]
  %v927 = vld [vmem:[%s6 + $0xf8] sm:$0xff]
  %v928 = vld [vmem:[%s7] sm:$0x1]
  %v930 = vlaneseq
  %v931 = vshrl.u32 %v930, 7
  %v932 = vsub.s32 0, %v931
  %v933 = vrot.slane %v928, %v932
  %935 = vmatprep.subr.mxu0 0.0
  %936 = vmatpush1.msra.mxu0 %v896
  %937 = vmatprep.subr.mxu0 0.0
  %938 = vmatpush1.msra.mxu0 %v897
  %939 = vmatprep.subr.mxu0 0.0
  %940 = vmatpush1.msra.mxu0 %v898
  %941 = vmatprep.subr.mxu0 0.0
  %942 = vmatpush1.msra.mxu0 %v899
  %943 = vmatprep.subr.mxu0 0.0
  %944 = vmatpush1.msra.mxu0 %v900
  %945 = vmatprep.subr.mxu0 0.0
  %946 = vmatpush1.msra.mxu0 %v901
  %947 = vmatprep.subr.mxu0 0.0
  %948 = vmatpush1.msra.mxu0 %v902
  %949 = vmatprep.subr.mxu0 0.0
  %950 = vmatpush1.msra.mxu0 %v903
  %951 = vmatprep.subr.mxu0 0.0
  %952 = vmatpush1.msra.mxu0 %v904
  %953 = vmatprep.subr.mxu0 0.0
  %954 = vmatpush1.msra.mxu0 %v905
  %955 = vmatprep.subr.mxu0 0.0
  %956 = vmatpush1.msra.mxu0 %v906
  %957 = vmatprep.subr.mxu0 0.0
  %958 = vmatpush1.msra.mxu0 %v907
  %959 = vmatprep.subr.mxu0 0.0
  %960 = vmatpush1.msra.mxu0 %v908
  %961 = vmatprep.subr.mxu0 0.0
  %962 = vmatpush1.msra.mxu0 %v909
  %963 = vmatprep.subr.mxu0 0.0
  %964 = vmatpush1.msra.mxu0 %v910
  %965 = vmatprep.subr.mxu0 0.0
  %966 = vmatpush1.msra.mxu0 %v911
  %967 = vmatprep.subr.mxu0 0.0
  %968 = vmatpush1.msra.mxu0 %v912
  %969 = vmatprep.subr.mxu0 0.0
  %970 = vmatpush1.msra.mxu0 %v913
  %971 = vmatprep.subr.mxu0 0.0
  %972 = vmatpush1.msra.mxu0 %v914
  %973 = vmatprep.subr.mxu0 0.0
  %974 = vmatpush1.msra.mxu0 %v915
  %975 = vmatprep.subr.mxu0 0.0
  %976 = vmatpush1.msra.mxu0 %v916
  %977 = vmatprep.subr.mxu0 0.0
  %978 = vmatpush1.msra.mxu0 %v917
  %979 = vmatprep.subr.mxu0 0.0
  %980 = vmatpush1.msra.mxu0 %v918
  %981 = vmatprep.subr.mxu0 0.0
  %982 = vmatpush1.msra.mxu0 %v919
  %983 = vmatprep.subr.mxu0 0.0
  %984 = vmatpush1.msra.mxu0 %v920
  %985 = vmatprep.subr.mxu0 0.0
  %986 = vmatpush1.msra.mxu0 %v921
  %987 = vmatprep.subr.mxu0 0.0
  %988 = vmatpush1.msra.mxu0 %v922
  %989 = vmatprep.subr.mxu0 0.0
  %990 = vmatpush1.msra.mxu0 %v923
  %991 = vmatprep.subr.mxu0 0.0
  %992 = vmatpush1.msra.mxu0 %v924
  %993 = vmatprep.subr.mxu0 0.0
  %994 = vmatpush1.msra.mxu0 %v925
  %995 = vmatprep.subr.mxu0 0.0
  %996 = vmatpush1.msra.mxu0 %v926
  %997 = vmatprep.subr.mxu0 0.0
  %998 = vmatpush1.msra.mxu0 %v927
  %999 = vmatprep.mubr.f32.mxu0 %v818
  %1000 = vmatmul.mubr.f32.gmra.mrb[0].mxu0 %v735
  %v1001 = vpop.f32.mrb[0].mxu0
  %v1002 = vadd.f32 %v933, %v1001
  %v1003 = vpop.f32.mrb[0].mxu0
  %1004 = vmatprep.mubr.f32.mxu0 %v823
  %1005 = vmatmul.mubr.f32.gmra.mrb[0].mxu0 %v736
  %v1006 = vpop.f32.mrb[0].mxu0
  %v1007 = vadd.f32 %v933, %v1006
  %v1008 = vpop.f32.mrb[0].mxu0
  %1009 = vmatprep.mubr.f32.mxu0 %v828
  %1010 = vmatmul.mubr.f32.gmra.mrb[0].mxu0 %v737
  %v1011 = vpop.f32.mrb[0].mxu0
  %v1012 = vadd.f32 %v933, %v1011
  %v1013 = vpop.f32.mrb[0].mxu0
  %1014 = vmatprep.mubr.f32.mxu0 %v833
  %1015 = vmatmul.mubr.f32.gmra.mrb[0].mxu0 %v738
  %v1016 = vpop.f32.mrb[0].mxu0
  %v1017 = vadd.f32 %v933, %v1016
  %v1018 = vpop.f32.mrb[0].mxu0
  %1019 = vmatprep.mubr.f32.mxu0 %v838
  %1020 = vmatmul.mubr.f32.gmra.mrb[0].mxu0 %v739
  %v1021 = vpop.f32.mrb[0].mxu0
  %v1022 = vadd.f32 %v933, %v1021
  %v1023 = vpop.f32.mrb[0].mxu0
  %1024 = vmatprep.mubr.f32.mxu0 %v843
  %1025 = vmatmul.mubr.f32.gmra.mrb[0].mxu0 %v740
  %v1026 = vpop.f32.mrb[0].mxu0
  %v1027 = vadd.f32 %v933, %v1026
  %v1028 = vpop.f32.mrb[0].mxu0
  %1029 = vmatprep.mubr.f32.mxu0 %v848
  %1030 = vmatmul.mubr.f32.gmra.mrb[0].mxu0 %v741
  %v1031 = vpop.f32.mrb[0].mxu0
  %v1032 = vadd.f32 %v933, %v1031
  %v1033 = vpop.f32.mrb[0].mxu0
  %1034 = vmatprep.mubr.f32.mxu0 %v853
  %1035 = vmatmul.mubr.f32.gmra.mrb[0].mxu0 %v742
  %v1036 = vpop.f32.mrb[0].mxu0
  %v1037 = vadd.f32 %v933, %v1036
  %v1038 = vpop.f32.mrb[0].mxu0
  %1039 = vmatprep.mubr.f32.mxu0 %v858
  %1040 = vmatmul.mubr.f32.gmra.mrb[0].mxu0 %v743
  %v1041 = vpop.f32.mrb[0].mxu0
  %v1042 = vadd.f32 %v933, %v1041
  %v1043 = vpop.f32.mrb[0].mxu0
  %1044 = vmatprep.mubr.f32.mxu0 %v863
  %1045 = vmatmul.mubr.f32.gmra.mrb[0].mxu0 %v744
  %v1046 = vpop.f32.mrb[0].mxu0
  %v1047 = vadd.f32 %v933, %v1046
  %v1048 = vpop.f32.mrb[0].mxu0
  %1049 = vmatprep.mubr.f32.mxu0 %v868
  %1050 = vmatmul.mubr.f32.gmra.mrb[0].mxu0 %v745
  %v1051 = vpop.f32.mrb[0].mxu0
  %v1052 = vadd.f32 %v933, %v1051
  %v1053 = vpop.f32.mrb[0].mxu0
  %1054 = vmatprep.mubr.f32.mxu0 %v873
  %1055 = vmatmul.mubr.f32.gmra.mrb[0].mxu0 %v746
  %v1056 = vpop.f32.mrb[0].mxu0
  %v1057 = vadd.f32 %v933, %v1056
  %v1058 = vpop.f32.mrb[0].mxu0
  %1059 = vmatprep.mubr.f32.mxu0 %v878
  %1060 = vmatmul.mubr.f32.gmra.mrb[0].mxu0 %v747
  %v1061 = vpop.f32.mrb[0].mxu0
  %v1062 = vadd.f32 %v933, %v1061
  %v1063 = vpop.f32.mrb[0].mxu0
  %1064 = vmatprep.mubr.f32.mxu0 %v883
  %1065 = vmatmul.mubr.f32.gmra.mrb[0].mxu0 %v748
  %v1066 = vpop.f32.mrb[0].mxu0
  %v1067 = vadd.f32 %v933, %v1066
  %v1068 = vpop.f32.mrb[0].mxu0
  %1069 = vmatprep.mubr.f32.mxu0 %v888
  %1070 = vmatmul.mubr.f32.gmra.mrb[0].mxu0 %v749
  %v1071 = vpop.f32.mrb[0].mxu0
  %v1072 = vadd.f32 %v933, %v1071
  %v1073 = vpop.f32.mrb[0].mxu0
  %1074 = vmatprep.mubr.f32.mxu0 %v893
  %1075 = vmatmul.mubr.f32.gmra.mrb[0].mxu0 %v750
  %v1076 = vpop.f32.mrb[0].mxu0
  %v1077 = vadd.f32 %v933, %v1076
  %v1078 = vpop.f32.mrb[0].mxu0
  %1079 = vdwg.mxu0
  %1080 = vst [vmem:[%s8] sm:$0xff] %v1002
  %1081 = vst [vmem:[%s8 + $0x8] sm:$0xff] %v1007
  %1082 = vst [vmem:[%s8 + $0x10] sm:$0xff] %v1012
  %1083 = vst [vmem:[%s8 + $0x18] sm:$0xff] %v1017
  %1084 = vst [vmem:[%s8 + $0x20] sm:$0xff] %v1022
  %1085 = vst [vmem:[%s8 + $0x28] sm:$0xff] %v1027
  %1086 = vst [vmem:[%s8 + $0x30] sm:$0xff] %v1032
  %1087 = vst [vmem:[%s8 + $0x38] sm:$0xff] %v1037
  %1088 = vst [vmem:[%s8 + $0x40] sm:$0xff] %v1042
  %1089 = vst [vmem:[%s8 + $0x48] sm:$0xff] %v1047
  %1090 = vst [vmem:[%s8 + $0x50] sm:$0xff] %v1052
  %1091 = vst [vmem:[%s8 + $0x58] sm:$0xff] %v1057
  %1092 = vst [vmem:[%s8 + $0x60] sm:$0xff] %v1062
  %1093 = vst [vmem:[%s8 + $0x68] sm:$0xff] %v1067
  %1094 = vst [vmem:[%s8 + $0x70] sm:$0xff] %v1072
  %1095 = vst [vmem:[%s8 + $0x78] sm:$0xff] %v1077
  // Predicated region
  $region34: #{gnn_forward.1} parent=0 // pred_check
    _
  $region35: #{gnn_forward.1} parent=0 // pred_check_branch
    %1097 = sbr.rel (0) target = $region37
  $region36: #{gnn_forward.1} parent=0 // pred_region
    _
  $region37: #{gnn_forward.1} parent=0 // pred_fallthru
    _
  // Predicated region
  $region38: #{gnn_forward.1} parent=0 // pred_check
    _
  $region39: #{gnn_forward.1} parent=0 // pred_check_branch
    %1099 = sbr.rel (0) target = $region41
  $region40: #{gnn_forward.1} parent=0 // pred_region
    _
  $region41: #{gnn_forward.1} parent=0 // pred_fallthru
    _

</llo_original>
